<compile_context>
chip_gen: v7x
topology: tpu7x:2x2x1
jax: 0.10.0
libtpu: 0.0.40
codegen_flags: <defaults>
</compile_context>

<pallas_src>
import math

import jax
import jax.numpy as jnp
from jax import lax
from jax.experimental import pallas as pl
from jax.experimental.pallas import tpu as pltpu


def _matmul_bias_kernel(x_ref, w_ref, b_ref, o_ref):
    """o = x @ w + b for one row tile.

    x_ref : (tm, K)  packed row windows [A | D | B | C]
    w_ref : (K, N)   banded honeycomb weight (resident across the grid)
    b_ref : (1, N)   bias tiled over output width, duplicated for [x1 | x2]
    o_ref : (tm, N)  lane-dense output tile [x1 | x2]
    """
    acc = jnp.dot(x_ref[...], w_ref[...], preferred_element_type=jnp.float32)
    o_ref[...] = (acc + b_ref[...]).astype(o_ref.dtype)


def _divisors(n):
    ds = set()
    i = 1
    while i * i <= n:
        if n % i == 0:
            ds.add(i)
            ds.add(n // i)
        i += 1
    return sorted(ds)


def _pick_row_tile(rows, k, n, itemsize):
    """Largest legal row tile (divisor of rows, mult of 8 or full, <=512) fitting VMEM."""
    pad8 = lambda v: -(-v // 8) * 8
    pad128 = lambda v: -(-v // 128) * 128

    def vmem_bytes(tm):
        x_blk = pad8(tm) * pad128(k) * itemsize
        o_blk = pad8(tm) * pad128(n) * itemsize
        w_blk = pad8(k) * pad128(n) * 4
        b_blk = 8 * pad128(n) * 4
        return 2 * (x_blk + o_blk) + 2 * (w_blk + b_blk)

    try:
        cap = int(getattr(pltpu.get_tpu_info(), "vmem_capacity_bytes", 0)) or (64 << 20)
    except Exception:  # interpret mode / older jax
        cap = 64 << 20
    budget = cap // 8   # ~16 MiB on v5e/v6e, ~8 MiB on v7x

    legal = [d for d in _divisors(rows) if (d % 8 == 0 or d == rows)]
    fits = [d for d in legal if vmem_bytes(d) <= budget] or [min(legal)]
    mxu_sized = [d for d in fits if d <= 512]
    return max(mxu_sized) if mxu_sized else min(fits)


def honeycomb_conv2d_share(x, weight, bias):
    """x: (B, Cin, H, W) NCHW; weight: (Cout, Cin, 3, 3) masked+scaled; bias: (Cout,)."""
    B, Cin, H, W = x.shape
    Cout = weight.shape[0]
    assert H % 2 == 0, "the module's cat+reshape requires an even height"
    Ho = H // 2
    Wp = W + 2
    KC = Wp * Cin          # one padded row, width-major / channel-minor
    K = 4 * KC             # [A | D | B | C]
    NWC = W * Cout
    N = 2 * NWC            # [x1 | x2]
    rows = B * Ho
    dt = x.dtype

    # ---- XLA-side layout plumbing (one fused pass): pad + row-window views ----
    xp = jnp.pad(jnp.transpose(x, (0, 2, 3, 1)), ((0, 0), (1, 1), (1, 1), (0, 0)))
    xp = xp.reshape(B, H + 2, KC)
    xA = xp[:, 0:H:2]          # padded rows 2m
    xB = xp[:, 1:H + 1:2]      # rows 2m+1
    xC = xp[:, 2:H + 2:2]      # rows 2m+2
    xD = xp[:, 3:H + 3:2]      # rows 2m+3
    xs = jnp.concatenate([xA, xD, xB, xC], axis=-1).reshape(rows, K)

    # ---- banded weight built once from the 4 honeycomb taps ----
    wt = weight.astype(jnp.float32)

    def band(entries):
        """entries: (kh, kw, col_off) -> (KC, NWC): w[:,:,kh,kw] on the band wcol = ow+col_off."""
        acc = jnp.zeros((Wp, Cin, W, Cout), jnp.float32)
        for kh, kw, off in entries:
            ind = jnp.eye(Wp, W, k=-off, dtype=jnp.float32)      # ind[ow+off, ow] = 1
            acc = acc + ind[:, None, :, None] * wt[:, :, kh, kw].T[None, :, None, :]
        return acc.reshape(KC, NWC)

    w_a = band([(0, 1, 1)])                    # A -> x1  and  D -> x2
    w_b1 = band([(1, 1, 1)])                   # B -> x1  and  C -> x2
    w_c1 = band([(2, 0, 0), (2, 1, 1)])        # C -> x1
    w_b2 = band([(2, 0, 2), (2, 1, 1)])        # B -> x2 (point-reflected column offsets)
    zero = jnp.zeros_like(w_a)
    w_big = jnp.concatenate([
        jnp.concatenate([w_a, zero], axis=1),     # A rows
        jnp.concatenate([zero, w_a], axis=1),     # D rows
        jnp.concatenate([w_b1, w_b2], axis=1),    # B rows
        jnp.concatenate([w_c1, w_b1], axis=1),    # C rows
    ], axis=0).astype(dt)                         # (K, N)
    bias_big = jnp.tile(bias.astype(jnp.float32), 2 * W).reshape(1, N)

    # ---- Pallas row-tiled matmul ----
    tm = _pick_row_tile(rows, K, N, dt.itemsize)
    grid = (rows // tm,)

    out2 = pl.pallas_call(
        _matmul_bias_kernel,
        out_shape=jax.ShapeDtypeStruct((rows, N), dt),
        grid_spec=pltpu.PrefetchScalarGridSpec(
            num_scalar_prefetch=0,
            grid=grid,
            in_specs=[
                pl.BlockSpec((tm, K), lambda i: (i, 0)),
                pl.BlockSpec((K, N), lambda i: (0, 0)),
                pl.BlockSpec((1, N), lambda i: (0, 0)),
            ],
            out_specs=pl.BlockSpec((tm, N), lambda i: (i, 0)),
        ),
        compiler_params=pltpu.CompilerParams(
            dimension_semantics=("parallel",)),
    )(xs, w_big, bias_big)

    # ---- XLA-side epilogue: x1/x2 row interleave (cat+reshape) and NCHW ----
    y = out2.reshape(B, H, W, Cout)          # rows alternate x1[m], x2[m]
    return jnp.transpose(y, (0, 3, 1, 2))


if __name__ == "__main__":
    B, Cin, Cout, H, W = 2, 4, 8, 16, 16
    key = jax.random.PRNGKey(0)
    k_x, k_w, k_b = jax.random.split(key, 3)

    x = jax.random.normal(k_x, (B, Cin, H, W), jnp.float32)

    # Conv2d-style init, then the module's sqrt(9/4) rescale and honeycomb mask.
    fan_in = Cin * 3 * 3
    bound = 1.0 / math.sqrt(fan_in)
    weight = jax.random.uniform(k_w, (Cout, Cin, 3, 3), jnp.float32, -bound, bound)
    bias = jax.random.uniform(k_b, (Cout,), jnp.float32, -bound, bound)
    scale = math.sqrt(9.0 / 4.0)
    weight = weight * scale
    bias = bias * scale
    mask2d = jnp.zeros((3, 3), jnp.float32)
    mask2d = mask2d.at[jnp.array([1, 0, 2, 2]), jnp.array([1, 1, 0, 1])].set(1.0)
    weight = weight * mask2d[None, None, :, :]
    # TODO(synk): kernel_size=5 branch of the module (5x3 window, 10 taps) not implemented;
    # only the default kernel_size=3 path is covered.

    out = jax.block_until_ready(jax.jit(honeycomb_conv2d_share)(x, weight, bias))
    assert out.shape == (B, Cout, H, W), out.shape

    # Pure-JAX reference with identical PyTorch semantics.
    def ref_forward(x, weight, bias):
        def conv(z):
            y = lax.conv_general_dilated(
                z, weight, window_strides=(2, 1), padding=((1, 1), (1, 1)),
                dimension_numbers=("NCHW", "OIHW", "NCHW"),
                precision=lax.Precision.HIGHEST)
            return y + bias[None, :, None, None]
        x1 = conv(x)
        x2 = conv(x[:, :, ::-1, ::-1])[:, :, ::-1, ::-1]
        xc = jnp.concatenate([x1, x2], axis=3)
        return xc.reshape(B, -1, H, W)

    ref = ref_forward(x, weight, bias)
    err = float(jnp.max(jnp.abs(out - ref)))
    assert jnp.allclose(out, ref, atol=2e-4, rtol=2e-4), err
    print("KERNEL_OK")
</pallas_src>

<mosaic_0001>
module attributes {stable_mosaic.version = 11 : i64} {
  func.func @_matmul_bias_kernel(%arg0: i32, %arg1: memref<16x288xf32, #tpu.memory_space<vmem>>, %arg2: memref<288x256xf32, #tpu.memory_space<vmem>>, %arg3: memref<1x256xf32, #tpu.memory_space<vmem>>, %arg4: memref<16x256xf32, #tpu.memory_space<vmem>>) attributes {dimension_semantics = [#tpu.dimension_semantics<parallel>], iteration_bounds = array<i64: 1>, scalar_prefetch = 0 : i64, scratch_operands = 0 : i64, tpu.core_type = #tpu.core_type<tc>, window_params = [{transform_indices = @transform_0, window_bounds = array<i64: 16, 288>}, {pipeline_mode = #tpu.pipeline_mode<synchronous>, transform_indices = @transform_1, window_bounds = array<i64: 288, 256>}, {pipeline_mode = #tpu.pipeline_mode<synchronous>, transform_indices = @transform_2, window_bounds = array<i64: 1, 256>}, {transform_indices = @transform_3, window_bounds = array<i64: 16, 256>}]} {
    %c0 = arith.constant 0 : index
    %c0_0 = arith.constant 0 : index
    %0 = vector.load %arg1[%c0, %c0_0] : memref<16x288xf32, #tpu.memory_space<vmem>>, vector<16x288xf32>
    %c0_1 = arith.constant 0 : index
    %c0_2 = arith.constant 0 : index
    %1 = vector.load %arg2[%c0_1, %c0_2] : memref<288x256xf32, #tpu.memory_space<vmem>>, vector<288x256xf32>
    %cst = arith.constant dense<0.000000e+00> : vector<16x256xf32>
    %2 = tpu.matmul %0, %1, %cst {dimension_numbers = #tpu.dot_dimension_numbers<[1], [0], [0], [1], [0, 0, 1, 1], [], []>} : vector<16x288xf32>, vector<288x256xf32>, vector<16x256xf32> -> vector<16x256xf32>
    %c0_3 = arith.constant 0 : index
    %c0_4 = arith.constant 0 : index
    %3 = vector.load %arg3[%c0_3, %c0_4] : memref<1x256xf32, #tpu.memory_space<vmem>>, vector<1x256xf32>
    %4 = vector.broadcast %3 : vector<1x256xf32> to vector<16x256xf32>
    %5 = arith.addf %2, %4 : vector<16x256xf32>
    %c0_5 = arith.constant 0 : index
    %c0_6 = arith.constant 0 : index
    %6 = vector.load %arg4[%c0_5, %c0_6] : memref<16x256xf32, #tpu.memory_space<vmem>>, vector<16x256xf32>
    tpu.vector_store %arg4[%c0_5, %c0_6], %5 {strides = array<i32>} : memref<16x256xf32, #tpu.memory_space<vmem>>, vector<16x256xf32>,
    return
  }
  func.func @transform_0(%arg0: i32) -> (i32, i32) {
    %c0_i32 = arith.constant 0 : i32
    %c0_i32_0 = arith.constant 0 : i32
    return %arg0, %c0_i32 : i32, i32
  }
  func.func @transform_1(%arg0: i32) -> (i32, i32) {
    %c0_i32 = arith.constant 0 : i32
    %c0_i32_0 = arith.constant 0 : i32
    %c0_i32_1 = arith.constant 0 : i32
    return %c0_i32, %c0_i32_0 : i32, i32
  }
  func.func @transform_2(%arg0: i32) -> (i32, i32) {
    %c0_i32 = arith.constant 0 : i32
    %c0_i32_0 = arith.constant 0 : i32
    %c0_i32_1 = arith.constant 0 : i32
    return %c0_i32, %c0_i32_0 : i32, i32
  }
  func.func @transform_3(%arg0: i32) -> (i32, i32) {
    %c0_i32 = arith.constant 0 : i32
    %c0_i32_0 = arith.constant 0 : i32
    return %arg0, %c0_i32 : i32, i32
  }
}

</mosaic_0001>

<llo_original>
// kernel: tile.8
$region0: #{tile.8}
  #allocation0 [shape = 's32[1]{0}', space=sflag, size = 0x4, scoped, tag = 'scoped memory for tile.8']
  %s0 = inlined_call_operand.vmem [shape: f32[8], index: 0, kind: input, shape index: {}]
  %s1 = inlined_call_operand.vmem [shape: f32[32,8], index: 1, kind: output, shape index: {}]
  // Predicated region
  $region2: #{tile.8} parent=0 // pred_check
    _
  $region3: #{tile.8} parent=0 // pred_check_branch
    %3 = sbr.rel (0) target = $region5
  $region4: #{tile.8} parent=0 // pred_region
    _
  $region5: #{tile.8} parent=0 // pred_fallthru
    _
  %v4 = vld [vmem:[%s0] ss:$0 sm:$0xff]
  %5 = vst [vmem:[%s1] sm:$0xff] %v4
  %s6 = scalar_lea.vmem %s1, 8
  %7 = vst [vmem:[%s6] sm:$0xff] %v4
  %s8 = scalar_lea.vmem %s1, 16
  %9 = vst [vmem:[%s8] sm:$0xff] %v4
  %s10 = scalar_lea.vmem %s1, 24
  %11 = vst [vmem:[%s10] sm:$0xff] %v4

// kernel: tile.9
$region0: #{tile.9}
  %s0 = inlined_call_operand.vmem [shape: f32[32,8], index: 0, kind: input, shape index: {}]
  %s1 = inlined_call_operand.vmem [shape: f32[1,256], index: 1, kind: output, shape index: {}]
  $region1: #{tile.9} parent=0
    #allocation0 [shape = 'u8[8192]{0}', space=vmem, size = 0x2000, scoped, tag = 'scoped mem for output reshape']
    %s2 = smov 3
    %v3 = vld [vmem:[%s0] ss:$16 sm:%s2]
    %vm4 = vcmask 64512
    %5 = vst.msk [vmem:[#allocation0] ss:$8 sm:$0x3] %vm4, %v3
    %s6 = scalar_lea.vmem %s0, 15
    %s7 = smov 3
    %v8 = vld [vmem:[%s6] ss:$16 sm:%s7]
    %9 = vrot.lane.b32.xlu0 %v8, 120
    %v10 = vpop.permute.xlu0 %9
    %vm11 = vcmask 1048512
    %12 = vst.msk [vmem:[#allocation0] ss:$8 sm:$0x3] %vm11, %v10
    %s13 = scalar_lea.vmem %s0, 14
    %s14 = smov 3
    %v15 = vld [vmem:[%s13] ss:$16 sm:%s14]
    %16 = vrot.lane.b32.xlu0 %v15, 112
    %v17 = vpop.permute.xlu0 %16
    %vm18 = vcmask 982912
    %19 = vst.msk [vmem:[#allocation0] ss:$8 sm:$0x3] %vm18, %v17
    %s20 = scalar_lea.vmem %s0, 13
    %s21 = smov 3
    %v22 = vld [vmem:[%s20] ss:$16 sm:%s21]
    %23 = vrot.lane.b32.xlu0 %v22, 104
    %v24 = vpop.permute.xlu0 %23
    %vm25 = vcmask 917312
    %26 = vst.msk [vmem:[#allocation0] ss:$8 sm:$0x3] %vm25, %v24
    %s27 = scalar_lea.vmem %s0, 12
    %s28 = smov 3
    %v29 = vld [vmem:[%s27] ss:$16 sm:%s28]
    %30 = vrot.lane.b32.xlu0 %v29, 96
    %v31 = vpop.permute.xlu0 %30
    %vm32 = vcmask 851712
    %33 = vst.msk [vmem:[#allocation0] ss:$8 sm:$0x3] %vm32, %v31
    %s34 = scalar_lea.vmem %s0, 11
    %s35 = smov 3
    %v36 = vld [vmem:[%s34] ss:$16 sm:%s35]
    %37 = vrot.lane.b32.xlu0 %v36, 88
    %v38 = vpop.permute.xlu0 %37
    %vm39 = vcmask 786112
    %40 = vst.msk [vmem:[#allocation0] ss:$8 sm:$0x3] %vm39, %v38
    %s41 = scalar_lea.vmem %s0, 10
    %s42 = smov 3
    %v43 = vld [vmem:[%s41] ss:$16 sm:%s42]
    %44 = vrot.lane.b32.xlu0 %v43, 80
    %v45 = vpop.permute.xlu0 %44
    %vm46 = vcmask 720512
    %47 = vst.msk [vmem:[#allocation0] ss:$8 sm:$0x3] %vm46, %v45
    %s48 = scalar_lea.vmem %s0, 9
    %s49 = smov 3
    %v50 = vld [vmem:[%s48] ss:$16 sm:%s49]
    %51 = vrot.lane.b32.xlu0 %v50, 72
    %v52 = vpop.permute.xlu0 %51
    %vm53 = vcmask 654912
    %54 = vst.msk [vmem:[#allocation0] ss:$8 sm:$0x3] %vm53, %v52
    %s55 = scalar_lea.vmem %s0, 8
    %s56 = smov 3
    %v57 = vld [vmem:[%s55] ss:$16 sm:%s56]
    %58 = vrot.lane.b32.xlu0 %v57, 64
    %v59 = vpop.permute.xlu0 %58
    %vm60 = vcmask 589312
    %61 = vst.msk [vmem:[#allocation0] ss:$8 sm:$0x3] %vm60, %v59
    %s62 = scalar_lea.vmem %s0, 7
    %s63 = smov 3
    %v64 = vld [vmem:[%s62] ss:$16 sm:%s63]
    %65 = vrot.lane.b32.xlu0 %v64, 56
    %v66 = vpop.permute.xlu0 %65
    %vm67 = vcmask 523712
    %68 = vst.msk [vmem:[#allocation0] ss:$8 sm:$0x3] %vm67, %v66
    %s69 = scalar_lea.vmem %s0, 6
    %s70 = smov 3
    %v71 = vld [vmem:[%s69] ss:$16 sm:%s70]
    %72 = vrot.lane.b32.xlu0 %v71, 48
    %v73 = vpop.permute.xlu0 %72
    %vm74 = vcmask 458112
    %75 = vst.msk [vmem:[#allocation0] ss:$8 sm:$0x3] %vm74, %v73
    %s76 = scalar_lea.vmem %s0, 5
    %s77 = smov 3
    %v78 = vld [vmem:[%s76] ss:$16 sm:%s77]
    %79 = vrot.lane.b32.xlu0 %v78, 40
    %v80 = vpop.permute.xlu0 %79
    %vm81 = vcmask 392512
    %82 = vst.msk [vmem:[#allocation0] ss:$8 sm:$0x3] %vm81, %v80
    %s83 = scalar_lea.vmem %s0, 4
    %s84 = smov 3
    %v85 = vld [vmem:[%s83] ss:$16 sm:%s84]
    %86 = vrot.lane.b32.xlu0 %v85, 32
    %v87 = vpop.permute.xlu0 %86
    %vm88 = vcmask 326912
    %89 = vst.msk [vmem:[#allocation0] ss:$8 sm:$0x3] %vm88, %v87
    %s90 = scalar_lea.vmem %s0, 3
    %s91 = smov 3
    %v92 = vld [vmem:[%s90] ss:$16 sm:%s91]
    %93 = vrot.lane.b32.xlu0 %v92, 24
    %v94 = vpop.permute.xlu0 %93
    %vm95 = vcmask 261312
    %96 = vst.msk [vmem:[#allocation0] ss:$8 sm:$0x3] %vm95, %v94
    %s97 = scalar_lea.vmem %s0, 2
    %s98 = smov 3
    %v99 = vld [vmem:[%s97] ss:$16 sm:%s98]
    %100 = vrot.lane.b32.xlu0 %v99, 16
    %v101 = vpop.permute.xlu0 %100
    %vm102 = vcmask 195712
    %103 = vst.msk [vmem:[#allocation0] ss:$8 sm:$0x3] %vm102, %v101
    %s104 = scalar_lea.vmem %s0, 1
    %s105 = smov 3
    %v106 = vld [vmem:[%s104] ss:$16 sm:%s105]
    %107 = vrot.lane.b32.xlu0 %v106, 8
    %v108 = vpop.permute.xlu0 %107
    %vm109 = vcmask 130112
    %110 = vst.msk [vmem:[#allocation0] ss:$8 sm:$0x3] %vm109, %v108
    %s112 = sshllo.u32 0, 1
    %v114 = vld [vmem:[#allocation0] sm:%s112]
    %s115 = sshllo.u32 0, 1
    %116 = vst [vmem:[%s1] sm:%s115] %v114
    %s117 = scalar_lea.vmem [#allocation0], 8
    %v118 = vld [vmem:[%s117] sm:%s112]
    %s119 = sshllo.u32 0, 1
    %s120 = scalar_lea.vmem %s1, 1
    %121 = vst [vmem:[%s120] sm:%s119] %v118

// kernel: honeycomb_conv2d_share.1
$region0: #{honeycomb_conv2d_share.1}
  #allocation0 [shape = 'u32[]', space=smem, size = 0x4, offset = 0x4, fixed_abs, tag = 'smem constant byte address 0x4 - core index']
  #allocation1 [shape = 'u32[144,128]{1,0:T(1,128)}', space=vmem, size = 0x12000, scoped, tag = 'internal scratch']
  %s0 = inlined_call_operand.vmem [shape: f32[16,288], index: 0, kind: input, shape index: {}]
  %s1 = inlined_call_operand.vmem [shape: f32[288,256], index: 1, kind: input, shape index: {}]
  %s2 = inlined_call_operand.vmem [shape: f32[1,256], index: 2, kind: input, shape index: {}]
  %s3 = inlined_call_operand.vmem [shape: f32[16,256], index: 3, kind: output, shape index: {}]
  %s4 = sld [smem:[#allocation0]]
  $region22: #{honeycomb_conv2d_share.1} parent=0
    _
  %s6 = ssub.s32 1, %s4
  %s7 = scalar_select 0, %s6, %s4
  // Predicated region
  $region2: #{honeycomb_conv2d_share.1} parent=0 // pred_check
    _
  $region3: #{honeycomb_conv2d_share.1} parent=0 // pred_check_branch
    %9 = sbr.rel (0) target = $region5
  $region4: #{honeycomb_conv2d_share.1} parent=0 // pred_region
    _
  $region5: #{honeycomb_conv2d_share.1} parent=0 // pred_fallthru
    _
  // Predicated region
  $region6: #{honeycomb_conv2d_share.1} parent=0 // pred_check
    _
  $region7: #{honeycomb_conv2d_share.1} parent=0 // pred_check_branch
    %11 = sbr.rel (0) target = $region9
  $region8: #{honeycomb_conv2d_share.1} parent=0 // pred_region
    _
  $region9: #{honeycomb_conv2d_share.1} parent=0 // pred_fallthru
    _
  // Predicated region
  $region10: #{honeycomb_conv2d_share.1} parent=0 // pred_check
    _
  $region11: #{honeycomb_conv2d_share.1} parent=0 // pred_check_branch
    %13 = sbr.rel (0) target = $region13
  $region12: #{honeycomb_conv2d_share.1} parent=0 // pred_region
    _
  $region13: #{honeycomb_conv2d_share.1} parent=0 // pred_fallthru
    _
  %v14 = vld [vmem:[%s0] sm:$0xff]
  %v15 = vld [vmem:[%s0 + $0x8] sm:$0xff]
  %v16 = vld [vmem:[%s0 + $0x10] sm:$0xff]
  %v17 = vld [vmem:[%s0 + $0x18] sm:$0xff]
  %v18 = vld [vmem:[%s0 + $0x20] sm:$0xff]
  %v19 = vld [vmem:[%s0 + $0x28] sm:$0xff]
  %v20 = vld [vmem:[%s1] sm:$0xff]
  %v21 = vld [vmem:[%s1 + $0x8] sm:$0xff]
  %v22 = vld [vmem:[%s1 + $0x10] sm:$0xff]
  %v23 = vld [vmem:[%s1 + $0x18] sm:$0xff]
  %v24 = vld [vmem:[%s1 + $0x20] sm:$0xff]
  %v25 = vld [vmem:[%s1 + $0x28] sm:$0xff]
  %v26 = vld [vmem:[%s1 + $0x30] sm:$0xff]
  %v27 = vld [vmem:[%s1 + $0x38] sm:$0xff]
  %v28 = vld [vmem:[%s1 + $0x40] sm:$0xff]
  %v29 = vld [vmem:[%s1 + $0x48] sm:$0xff]
  %v30 = vld [vmem:[%s1 + $0x50] sm:$0xff]
  %v31 = vld [vmem:[%s1 + $0x58] sm:$0xff]
  %v32 = vld [vmem:[%s1 + $0x60] sm:$0xff]
  %v33 = vld [vmem:[%s1 + $0x68] sm:$0xff]
  %v34 = vld [vmem:[%s1 + $0x70] sm:$0xff]
  %v35 = vld [vmem:[%s1 + $0x78] sm:$0xff]
  %v36 = vld [vmem:[%s1 + $0x80] sm:$0xff]
  %v37 = vld [vmem:[%s1 + $0x88] sm:$0xff]
  %v38 = vld [vmem:[%s1 + $0x90] sm:$0xff]
  %v39 = vld [vmem:[%s1 + $0x98] sm:$0xff]
  %v40 = vld [vmem:[%s1 + $0xa0] sm:$0xff]
  %v41 = vld [vmem:[%s1 + $0xa8] sm:$0xff]
  %v42 = vld [vmem:[%s1 + $0xb0] sm:$0xff]
  %v43 = vld [vmem:[%s1 + $0xb8] sm:$0xff]
  %v44 = vld [vmem:[%s1 + $0xc0] sm:$0xff]
  %v45 = vld [vmem:[%s1 + $0xc8] sm:$0xff]
  %v46 = vld [vmem:[%s1 + $0xd0] sm:$0xff]
  %v47 = vld [vmem:[%s1 + $0xd8] sm:$0xff]
  %v48 = vld [vmem:[%s1 + $0xe0] sm:$0xff]
  %v49 = vld [vmem:[%s1 + $0xe8] sm:$0xff]
  %v50 = vld [vmem:[%s1 + $0xf0] sm:$0xff]
  %v51 = vld [vmem:[%s1 + $0xf8] sm:$0xff]
  %v52 = vld [vmem:[%s1 + $0x100] sm:$0xff]
  %v53 = vld [vmem:[%s1 + $0x108] sm:$0xff]
  %v54 = vld [vmem:[%s1 + $0x110] sm:$0xff]
  %v55 = vld [vmem:[%s1 + $0x118] sm:$0xff]
  %v56 = vld [vmem:[%s1 + $0x120] sm:$0xff]
  %v57 = vld [vmem:[%s1 + $0x128] sm:$0xff]
  %v58 = vld [vmem:[%s1 + $0x130] sm:$0xff]
  %v59 = vld [vmem:[%s1 + $0x138] sm:$0xff]
  %v60 = vld [vmem:[%s1 + $0x140] sm:$0xff]
  %v61 = vld [vmem:[%s1 + $0x148] sm:$0xff]
  %v62 = vld [vmem:[%s1 + $0x150] sm:$0xff]
  %v63 = vld [vmem:[%s1 + $0x158] sm:$0xff]
  %v64 = vld [vmem:[%s1 + $0x160] sm:$0xff]
  %v65 = vld [vmem:[%s1 + $0x168] sm:$0xff]
  %v66 = vld [vmem:[%s1 + $0x170] sm:$0xff]
  %v67 = vld [vmem:[%s1 + $0x178] sm:$0xff]
  %v68 = vld [vmem:[%s1 + $0x180] sm:$0xff]
  %v69 = vld [vmem:[%s1 + $0x188] sm:$0xff]
  %v70 = vld [vmem:[%s1 + $0x190] sm:$0xff]
  %v71 = vld [vmem:[%s1 + $0x198] sm:$0xff]
  %v72 = vld [vmem:[%s1 + $0x1a0] sm:$0xff]
  %v73 = vld [vmem:[%s1 + $0x1a8] sm:$0xff]
  %v74 = vld [vmem:[%s1 + $0x1b0] sm:$0xff]
  %v75 = vld [vmem:[%s1 + $0x1b8] sm:$0xff]
  %v76 = vld [vmem:[%s1 + $0x1c0] sm:$0xff]
  %v77 = vld [vmem:[%s1 + $0x1c8] sm:$0xff]
  %v78 = vld [vmem:[%s1 + $0x1d0] sm:$0xff]
  %v79 = vld [vmem:[%s1 + $0x1d8] sm:$0xff]
  %v80 = vld [vmem:[%s1 + $0x1e0] sm:$0xff]
  %v81 = vld [vmem:[%s1 + $0x1e8] sm:$0xff]
  %v82 = vld [vmem:[%s1 + $0x1f0] sm:$0xff]
  %v83 = vld [vmem:[%s1 + $0x1f8] sm:$0xff]
  %v84 = vld [vmem:[%s1 + $0x200] sm:$0xff]
  %v85 = vld [vmem:[%s1 + $0x208] sm:$0xff]
  %v86 = vld [vmem:[%s1 + $0x210] sm:$0xff]
  %v87 = vld [vmem:[%s1 + $0x218] sm:$0xff]
  %v88 = vld [vmem:[%s1 + $0x220] sm:$0xff]
  %v89 = vld [vmem:[%s1 + $0x228] sm:$0xff]
  %v90 = vld [vmem:[%s1 + $0x230] sm:$0xff]
  %v91 = vld [vmem:[%s1 + $0x238] sm:$0xff]
  %v92 = vld [vmem:[%s2] sm:$0x3]
  %v94 = vlaneseq
  %v95 = vshrl.u32 %v94, 7
  %v96 = vsub.s32 0, %v95
  %v97 = vrot.slane %v92, %v96
  %v98 = vlaneseq
  %v99 = vshrl.u32 %v98, 7
  %v100 = vsub.s32 1, %v99
  %v101 = vrot.slane %v92, %v100
  %vm104 = vcmask 261120
  %v106 = vsel %vm104, %v16, 0
  %v109 = vsel %vm104, %v19, 0
  %111 = vmatprep.subr.mxu0 %v21
  %112 = vmatpush1.msra.mxu0 %v20
  %113 = vmatprep.subr.mxu0 %v23
  %114 = vmatpush1.msra.mxu0 %v22
  %115 = vmatprep.subr.mxu0 %v25
  %116 = vmatpush1.msra.mxu0 %v24
  %117 = vmatprep.subr.mxu0 %v27
  %118 = vmatpush1.msra.mxu0 %v26
  %119 = vmatprep.subr.mxu0 %v29
  %120 = vmatpush1.msra.mxu0 %v28
  %121 = vmatprep.subr.mxu0 %v31
  %122 = vmatpush1.msra.mxu0 %v30
  %123 = vmatprep.subr.mxu0 %v33
  %124 = vmatpush1.msra.mxu0 %v32
  %125 = vmatprep.subr.mxu0 %v35
  %126 = vmatpush1.msra.mxu0 %v34
  %127 = vmatprep.subr.mxu0 %v37
  %128 = vmatpush1.msra.mxu0 %v36
  %129 = vmatprep.subr.mxu0 %v39
  %130 = vmatpush1.msra.mxu0 %v38
  %131 = vmatprep.subr.mxu0 %v41
  %132 = vmatpush1.msra.mxu0 %v40
  %133 = vmatprep.subr.mxu0 %v43
  %134 = vmatpush1.msra.mxu0 %v42
  %135 = vmatprep.subr.mxu0 %v45
  %136 = vmatpush1.msra.mxu0 %v44
  %137 = vmatprep.subr.mxu0 %v47
  %138 = vmatpush1.msra.mxu0 %v46
  %139 = vmatprep.subr.mxu0 %v49
  %140 = vmatpush1.msra.mxu0 %v48
  %141 = vmatprep.subr.mxu0 %v51
  %142 = vmatpush1.msra.mxu0 %v50
  %143 = vmatprep.subr.mxu0 %v53
  %144 = vmatpush1.msra.mxu0 %v52
  %145 = vmatprep.subr.mxu0 %v55
  %146 = vmatpush1.msra.mxu0 %v54
  %147 = vmatprep.subr.mxu0 %v57
  %148 = vmatpush1.msra.mxu0 %v56
  %149 = vmatprep.subr.mxu0 %v59
  %150 = vmatpush1.msra.mxu0 %v58
  %151 = vmatprep.subr.mxu0 %v61
  %152 = vmatpush1.msra.mxu0 %v60
  %153 = vmatprep.subr.mxu0 %v63
  %154 = vmatpush1.msra.mxu0 %v62
  %155 = vmatprep.subr.mxu0 %v65
  %156 = vmatpush1.msra.mxu0 %v64
  %157 = vmatprep.subr.mxu0 %v67
  %158 = vmatpush1.msra.mxu0 %v66
  %159 = vmatprep.subr.mxu0 %v69
  %160 = vmatpush1.msra.mxu0 %v68
  %161 = vmatprep.subr.mxu0 %v71
  %162 = vmatpush1.msra.mxu0 %v70
  %163 = vmatprep.subr.mxu0 %v73
  %164 = vmatpush1.msra.mxu0 %v72
  %165 = vmatprep.subr.mxu0 %v75
  %166 = vmatpush1.msra.mxu0 %v74
  %167 = vmatprep.subr.mxu0 %v77
  %168 = vmatpush1.msra.mxu0 %v76
  %169 = vmatprep.subr.mxu0 %v79
  %170 = vmatpush1.msra.mxu0 %v78
  %171 = vmatprep.subr.mxu0 %v81
  %172 = vmatpush1.msra.mxu0 %v80
  %173 = vmatprep.subr.mxu0 %v83
  %174 = vmatpush1.msra.mxu0 %v82
  %175 = vmatprep.mubr.f32.mxu0 %v15
  %176 = vmatmul.mubr.f32.gmra.mrb[0].mxu0 %v14
  %v177 = vpop.f32.mrb[0].mxu0
  %v178 = vadd.f32 %v97, %v177
  %v179 = vpop.f32.mrb[0].mxu0
  %v180 = vadd.f32 %v101, %v179
  %181 = vmatprep.mubr.f32.mxu0 %v18
  %182 = vmatmul.mubr.f32.gmra.mrb[0].mxu0 %v17
  %v183 = vpop.f32.mrb[0].mxu0
  %v184 = vadd.f32 %v97, %v183
  %v185 = vpop.f32.mrb[0].mxu0
  %v186 = vadd.f32 %v101, %v185
  %187 = vdwg.mxu0
  %188 = vmatprep.subr.mxu0 %v85
  %189 = vmatpush1.msra.mxu0 %v84
  %190 = vmatprep.subr.mxu0 %v87
  %191 = vmatpush1.msra.mxu0 %v86
  %192 = vmatprep.subr.mxu0 %v89
  %193 = vmatpush1.msra.mxu0 %v88
  %194 = vmatprep.subr.mxu0 %v91
  %195 = vmatpush1.msra.mxu0 %v90
  %196 = vmatprep.subr.mxu0 0.0
  %197 = vmatpush1.msra.mxu0 0.0
  %198 = vmatprep.subr.mxu0 0.0
  %199 = vmatpush1.msra.mxu0 0.0
  %200 = vmatprep.subr.mxu0 0.0
  %201 = vmatpush1.msra.mxu0 0.0
  %202 = vmatprep.subr.mxu0 0.0
  %203 = vmatpush1.msra.mxu0 0.0
  %204 = vmatprep.subr.mxu0 0.0
  %205 = vmatpush1.msra.mxu0 0.0
  %206 = vmatprep.subr.mxu0 0.0
  %207 = vmatpush1.msra.mxu0 0.0
  %208 = vmatprep.subr.mxu0 0.0
  %209 = vmatpush1.msra.mxu0 0.0
  %210 = vmatprep.subr.mxu0 0.0
  %211 = vmatpush1.msra.mxu0 0.0
  %212 = vmatprep.subr.mxu0 0.0
  %213 = vmatpush1.msra.mxu0 0.0
  %214 = vmatprep.subr.mxu0 0.0
  %215 = vmatpush1.msra.mxu0 0.0
  %216 = vmatprep.subr.mxu0 0.0
  %217 = vmatpush1.msra.mxu0 0.0
  %218 = vmatprep.subr.mxu0 0.0
  %219 = vmatpush1.msra.mxu0 0.0
  %220 = vmatprep.subr.mxu0 0.0
  %221 = vmatpush1.msra.mxu0 0.0
  %222 = vmatprep.subr.mxu0 0.0
  %223 = vmatpush1.msra.mxu0 0.0
  %224 = vmatprep.subr.mxu0 0.0
  %225 = vmatpush1.msra.mxu0 0.0
  %226 = vmatprep.subr.mxu0 0.0
  %227 = vmatpush1.msra.mxu0 0.0
  %228 = vmatprep.subr.mxu0 0.0
  %229 = vmatpush1.msra.mxu0 0.0
  %230 = vmatprep.subr.mxu0 0.0
  %231 = vmatpush1.msra.mxu0 0.0
  %232 = vmatprep.subr.mxu0 0.0
  %233 = vmatpush1.msra.mxu0 0.0
  %234 = vmatprep.subr.mxu0 0.0
  %235 = vmatpush1.msra.mxu0 0.0
  %236 = vmatprep.subr.mxu0 0.0
  %237 = vmatpush1.msra.mxu0 0.0
  %238 = vmatprep.subr.mxu0 0.0
  %239 = vmatpush1.msra.mxu0 0.0
  %240 = vmatprep.subr.mxu0 0.0
  %241 = vmatpush1.msra.mxu0 0.0
  %242 = vmatprep.subr.mxu0 0.0
  %243 = vmatpush1.msra.mxu0 0.0
  %244 = vmatprep.subr.mxu0 0.0
  %245 = vmatpush1.msra.mxu0 0.0
  %246 = vmatprep.subr.mxu0 0.0
  %247 = vmatpush1.msra.mxu0 0.0
  %248 = vmatprep.subr.mxu0 0.0
  %249 = vmatpush1.msra.mxu0 0.0
  %250 = vmatprep.subr.mxu0 0.0
  %251 = vmatpush1.msra.mxu0 0.0
  %252 = vmatprep.mubr.f32.mxu0 0.0
  %253 = vmatmul.mubr.f32.gmra.mrb[0].mxu0 %v106
  %v254 = vpop.f32.mrb[0].mxu0
  %v255 = vadd.f32 %v178, %v254
  %v256 = vpop.f32.mrb[0].mxu0
  %v257 = vadd.f32 %v180, %v256
  %258 = vmatprep.mubr.f32.mxu0 0.0
  %259 = vmatmul.mubr.f32.gmra.mrb[0].mxu0 %v109
  %v260 = vpop.f32.mrb[0].mxu0
  %v261 = vadd.f32 %v184, %v260
  %v262 = vpop.f32.mrb[0].mxu0
  %v263 = vadd.f32 %v186, %v262
  %264 = vdwg.mxu0
  %265 = vst [vmem:[%s3] sm:$0xff] %v255
  %266 = vst [vmem:[%s3 + $0x8] sm:$0xff] %v257
  %267 = vst [vmem:[%s3 + $0x10] sm:$0xff] %v261
  %268 = vst [vmem:[%s3 + $0x18] sm:$0xff] %v263
  // Predicated region
  $region14: #{honeycomb_conv2d_share.1} parent=0 // pred_check
    _
  $region15: #{honeycomb_conv2d_share.1} parent=0 // pred_check_branch
    %270 = sbr.rel (0) target = $region17
  $region16: #{honeycomb_conv2d_share.1} parent=0 // pred_region
    _
  $region17: #{honeycomb_conv2d_share.1} parent=0 // pred_fallthru
    _
  // Predicated region
  $region18: #{honeycomb_conv2d_share.1} parent=0 // pred_check
    _
  $region19: #{honeycomb_conv2d_share.1} parent=0 // pred_check_branch
    %272 = sbr.rel (0) target = $region21
  $region20: #{honeycomb_conv2d_share.1} parent=0 // pred_region
    _
  $region21: #{honeycomb_conv2d_share.1} parent=0 // pred_fallthru
    _

</llo_original>
